<compile_context>
chip_gen: v7x
topology: tpu7x:2x2x1
jax: 0.10.0
libtpu: 0.0.40
codegen_flags: <defaults>
</compile_context>

<pallas_src>
import jax
import jax.numpy as jnp
from jax.experimental import pallas as pl
from jax.experimental.pallas import tpu as pltpu


def _round_up(v, m):
    return ((v + m - 1) // m) * m


def token_sdp_kernel(x_ref, wc_ref, bc_ref, wf_ref, bf_ref, o_ref, lhs_ref):
    # x_ref:   (bb*L, D)   f32   input embeddings (batch block, flattened rows)
    # wc_ref:  (K*D, F)    bf16  im2col-packed conv weights
    # bc_ref:  (1, F)      f32   conv bias
    # wf_ref:  (F, FCp)    bf16  fc weights (lane-padded to FCp)
    # bf_ref:  (1, FCp)    f32   fc bias (lane-padded)
    # o_ref:   (bb, FCp)   f32   output (lane-padded)
    # lhs_ref: (bb*L, K*D) bf16  VMEM scratch: im2col LHS
    n, D = x_ref.shape
    KD, F = wc_ref.shape
    K = KD // D
    TB = o_ref.shape[0]
    L = n // TB
    T = L - K + 1  # conv output length == MaxPool1d kernel size

    # In-kernel bf16 cast (VPU; overlapped by the pipeline) -- x is DMA'd as f32.
    xb = x_ref[...].astype(jnp.bfloat16)                      # (n, D)

    # im2col build: lhs[b*L + t, k*D + d] = x[b, t + k, d].
    # Shift-by-k copies of a 32-lane bf16 tensor (cheap); wrapped tail rows only
    # reach conv rows t >= T, which are discarded below, but we zero them anyway.
    # (pltpu.roll along the row axis would do the same shift on the XLU slot.)
    lhs_ref[:, 0:D] = xb
    for k in range(1, K):                                     # K is tiny & static
        lhs_ref[0:n - k, k * D:(k + 1) * D] = xb[k:n, :]
        lhs_ref[n - k:n, k * D:(k + 1) * D] = jnp.zeros((k, D), jnp.bfloat16)

    # Single fused MXU matmul: contraction depth K*D, output width F (one
    # column tile even on v5e's 128-wide MXU). f32 accumulation.
    conv = jnp.dot(lhs_ref[...], wc_ref[...],
                   preferred_element_type=jnp.float32)        # (n, F)
    conv = conv.reshape(TB, L, F)                             # L multiple of 8: cheap

    # Global max pool over the T valid positions, then per-filter bias + ReLU
    # (bias is per-filter and ReLU is monotone, so they commute with the max).
    pooled = jnp.maximum(jnp.max(conv[:, :T, :], axis=1) + bc_ref[...], 0.0)  # (TB, F)

    # FC + ReLU. FCp is a multiple of 128 -> lane-dense, unmasked stores.
    fc = jnp.dot(pooled.astype(wf_ref.dtype), wf_ref[...],
                 preferred_element_type=jnp.float32) + bf_ref[...]
    o_ref[...] = jnp.maximum(fc, 0.0)


def prepare_token_sdp_params(w_cnn, b_cnn, w_fc, b_fc):
    """One-time (hoisted) repack of PyTorch-layout weights into kernel layouts."""
    F, D, K = w_cnn.shape            # Conv1d weight (out_ch=F, in_ch=D, K)
    FC = w_fc.shape[0]               # Linear weight (FC, F)

    # im2col weight: (F, D, K) -> (K*D, F) with wc[k*D + d, f] = w_cnn[f, d, k].
    wc = jnp.transpose(w_cnn, (2, 1, 0)).reshape(K * D, F).astype(jnp.bfloat16)
    bc = b_cnn.reshape(1, F).astype(jnp.float32)

    # (FC, F) -> (F, FCp) with FCp padded to a multiple of 128 lanes (zeros).
    FCp = max(128, _round_up(FC, 128))
    wf = jnp.zeros((F, FCp), jnp.float32).at[:, :FC].set(w_fc.T).astype(jnp.bfloat16)
    bf = jnp.zeros((1, FCp), jnp.float32).at[:, :FC].set(b_fc.astype(jnp.float32))

    return {"wc": wc, "bc": bc, "wf": wf, "bf": bf,
            "D": D, "K": K, "F": F, "FC": FC, "FCp": FCp, "KD": K * D}


def token_sdp(x, params, *, block_b=1024):
    """x: (B, L, D) f32/bf16. params: output of prepare_token_sdp_params.

    block_b ~= 512-1024 is a good target on v7x (64 MiB VMEM); raise toward
    1024-2048 on v5e/v6e (128 MiB VMEM) for very large batches.
    """
    B, L, D = x.shape
    assert D == params["D"], "word_dim mismatch"
    K, F, FC, FCp, KD = (params["K"], params["F"], params["FC"],
                         params["FCp"], params["KD"])
    assert L >= K, "sequence shorter than conv kernel"
    T = L - K + 1

    # Batch block size: guarantee >= 2 grid blocks when B > 8 so the "parallel"
    # batch axis shards across v7x's two TensorCores; blocks are sublane-aligned
    # (multiple of 8) whenever more than one block exists. No explicit padding:
    # Pallas masks partial boundary blocks, and batch rows are independent.
    if B <= 8:
        bb = B
    else:
        bb = min(block_b, _round_up(pl.cdiv(B, 2), 8))
    n_blk = pl.cdiv(B, bb)

    # Free row-major reshape in HBM: each grid step DMAs one contiguous chunk.
    # The bf16 cast happens inside the kernel -- no wrapper-side astype/pad copy.
    x2 = x.reshape(B * L, D)

    flops = 2 * B * L * KD * F + 2 * B * F * FCp
    bytes_accessed = (B * L * D * x2.dtype.itemsize
                      + KD * F * 2 + F * FCp * 2 + F * 4 + FCp * 4
                      + B * FCp * 4)

    out = pl.pallas_call(
        token_sdp_kernel,
        out_shape=jax.ShapeDtypeStruct((B, FCp), jnp.float32),
        grid_spec=pltpu.PrefetchScalarGridSpec(
            num_scalar_prefetch=0,
            grid=(n_blk,),
            in_specs=[
                pl.BlockSpec((bb * L, D), lambda i: (i, 0)),   # x block (f32)
                pl.BlockSpec((KD, F), lambda i: (0, 0)),       # im2col conv weights
                pl.BlockSpec((1, F), lambda i: (0, 0)),        # conv bias
                pl.BlockSpec((F, FCp), lambda i: (0, 0)),      # fc weights
                pl.BlockSpec((1, FCp), lambda i: (0, 0)),      # fc bias
            ],
            out_specs=pl.BlockSpec((bb, FCp), lambda i: (i, 0)),
            scratch_shapes=[pltpu.VMEM((bb * L, KD), jnp.bfloat16)],  # im2col LHS
        ),
        compiler_params=pltpu.CompilerParams(
            dimension_semantics=("parallel",),                 # 2x on v7x's 2 TCs
            vmem_limit_bytes=64 * 1024 * 1024,                 # explicit (v5e default is 16 MiB)
        ),
        cost_estimate=pl.CostEstimate(flops=int(flops), transcendentals=0,
                                      bytes_accessed=int(bytes_accessed)),
    )(x2, params["wc"], params["bc"], params["wf"], params["bf"])

    return out[:, :FC]


def token_sdp_reference(x, w_cnn, b_cnn, w_fc, b_fc):
    """Plain-JAX f32 reference mirroring the PyTorch forward (dropouts = identity)."""
    F, D, K = w_cnn.shape
    B, L, _ = x.shape
    T = L - K + 1
    acc = jnp.zeros((B, T, F), jnp.float32)
    for k in range(K):
        acc = acc + jnp.einsum("btd,fd->btf", x[:, k:k + T, :], w_cnn[:, :, k])
    conv = jax.nn.relu(acc + b_cnn[None, None, :])
    pooled = jnp.max(conv, axis=1)
    return jax.nn.relu(pooled @ w_fc.T + b_fc[None, :])


if __name__ == "__main__":
    # Module hyperparameters (small, consistent with the forward pass).
    word_dim = 32          # D
    max_sdp_len = 16       # L
    sdp_kernel_len = 3     # K
    sdp_filter_nb = 64     # F
    sdp_fc_dim = 32        # FC
    batch = 2              # B

    key = jax.random.PRNGKey(0)
    kx, kwc, kbc, kwf, kbf = jax.random.split(key, 5)

    x = jax.random.normal(kx, (batch, max_sdp_len, word_dim), dtype=jnp.float32)
    # Deterministic synthetic parameters in PyTorch layouts.
    w_cnn = 0.1 * jax.random.normal(kwc, (sdp_filter_nb, word_dim, sdp_kernel_len), jnp.float32)
    b_cnn = 0.1 * jax.random.normal(kbc, (sdp_filter_nb,), jnp.float32)
    w_fc = 0.1 * jax.random.normal(kwf, (sdp_fc_dim, sdp_filter_nb), jnp.float32)
    b_fc = 0.1 * jax.random.normal(kbf, (sdp_fc_dim,), jnp.float32)

    # Hoisted, one-time weight repacking (not on the per-call path).
    params = prepare_token_sdp_params(w_cnn, b_cnn, w_fc, b_fc)

    out = token_sdp(x, params)
    out = jax.block_until_ready(out)

    ref = token_sdp_reference(x, w_cnn, b_cnn, w_fc, b_fc)
    assert out.shape == (batch, sdp_fc_dim)
    # bf16 MXU operands (f32 accumulation) -> loosened tolerance.
    assert jnp.allclose(out, ref, atol=3e-2, rtol=3e-2), "mismatch vs reference"

    # TODO(synk): dropout layers are identity here (eval mode); no RNG dropout kernel.
    print("KERNEL_OK")
</pallas_src>

<mosaic_0001>
module attributes {stable_mosaic.version = 11 : i64} {
  func.func @token_sdp_kernel(%arg0: i32, %arg1: memref<32x32xf32, #tpu.memory_space<vmem>>, %arg2: memref<96x64xbf16, #tpu.memory_space<vmem>>, %arg3: memref<1x64xf32, #tpu.memory_space<vmem>>, %arg4: memref<64x128xbf16, #tpu.memory_space<vmem>>, %arg5: memref<1x128xf32, #tpu.memory_space<vmem>>, %arg6: memref<2x128xf32, #tpu.memory_space<vmem>>, %arg7: memref<32x96xbf16, #tpu.memory_space<vmem>>) attributes {dimension_semantics = [#tpu.dimension_semantics<parallel>], iteration_bounds = array<i64: 1>, scalar_prefetch = 0 : i64, scratch_operands = 1 : i64, tpu.core_type = #tpu.core_type<tc>, window_params = [{transform_indices = @transform_0, window_bounds = array<i64: 32, 32>}, {pipeline_mode = #tpu.pipeline_mode<synchronous>, transform_indices = @transform_1, window_bounds = array<i64: 96, 64>}, {pipeline_mode = #tpu.pipeline_mode<synchronous>, transform_indices = @transform_2, window_bounds = array<i64: 1, 64>}, {pipeline_mode = #tpu.pipeline_mode<synchronous>, transform_indices = @transform_3, window_bounds = array<i64: 64, 128>}, {pipeline_mode = #tpu.pipeline_mode<synchronous>, transform_indices = @transform_4, window_bounds = array<i64: 1, 128>}, {transform_indices = @transform_5, window_bounds = array<i64: 2, 128>}]} {
    %c0 = arith.constant 0 : index
    %c0_0 = arith.constant 0 : index
    %0 = vector.load %arg1[%c0, %c0_0] : memref<32x32xf32, #tpu.memory_space<vmem>>, vector<32x32xf32>
    %1 = arith.truncf %0 : vector<32x32xf32> to vector<32x32xbf16>
    %c0_1 = arith.constant 0 : index
    %c0_2 = arith.constant 0 : index
    %2 = vector.load %arg7[%c0_1, %c0_2] : memref<32x96xbf16, #tpu.memory_space<vmem>>, vector<32x32xbf16>
    tpu.vector_store %arg7[%c0_1, %c0_2], %1 {strides = array<i32>} : memref<32x96xbf16, #tpu.memory_space<vmem>>, vector<32x32xbf16>,
    %3 = vector.extract_strided_slice %1 {offsets = [1, 0], sizes = [31, 32], strides = [1, 1]} : vector<32x32xbf16> to vector<31x32xbf16>
    %c0_3 = arith.constant 0 : index
    %c32 = arith.constant 32 : index
    %4 = vector.load %arg7[%c0_3, %c32] : memref<32x96xbf16, #tpu.memory_space<vmem>>, vector<31x32xbf16>
    tpu.vector_store %arg7[%c0_3, %c32], %3 {strides = array<i32>} : memref<32x96xbf16, #tpu.memory_space<vmem>>, vector<31x32xbf16>,
    %cst = arith.constant 0.000000e+00 : bf16
    %5 = vector.broadcast %cst : bf16 to vector<1x32xbf16>
    %c31 = arith.constant 31 : index
    %c32_4 = arith.constant 32 : index
    %6 = vector.load %arg7[%c31, %c32_4] : memref<32x96xbf16, #tpu.memory_space<vmem>>, vector<1x32xbf16>
    tpu.vector_store %arg7[%c31, %c32_4], %5 {strides = array<i32>} : memref<32x96xbf16, #tpu.memory_space<vmem>>, vector<1x32xbf16>,
    %7 = vector.extract_strided_slice %1 {offsets = [2, 0], sizes = [30, 32], strides = [1, 1]} : vector<32x32xbf16> to vector<30x32xbf16>
    %c0_5 = arith.constant 0 : index
    %c64 = arith.constant 64 : index
    %8 = vector.load %arg7[%c0_5, %c64] : memref<32x96xbf16, #tpu.memory_space<vmem>>, vector<30x32xbf16>
    tpu.vector_store %arg7[%c0_5, %c64], %7 {strides = array<i32>} : memref<32x96xbf16, #tpu.memory_space<vmem>>, vector<30x32xbf16>,
    %cst_6 = arith.constant 0.000000e+00 : bf16
    %9 = vector.broadcast %cst_6 : bf16 to vector<2x32xbf16>
    %c30 = arith.constant 30 : index
    %c64_7 = arith.constant 64 : index
    %10 = vector.load %arg7[%c30, %c64_7] : memref<32x96xbf16, #tpu.memory_space<vmem>>, vector<2x32xbf16>
    tpu.vector_store %arg7[%c30, %c64_7], %9 {strides = array<i32>} : memref<32x96xbf16, #tpu.memory_space<vmem>>, vector<2x32xbf16>,
    %c0_8 = arith.constant 0 : index
    %c0_9 = arith.constant 0 : index
    %11 = vector.load %arg7[%c0_8, %c0_9] : memref<32x96xbf16, #tpu.memory_space<vmem>>, vector<32x96xbf16>
    %c0_10 = arith.constant 0 : index
    %c0_11 = arith.constant 0 : index
    %12 = vector.load %arg2[%c0_10, %c0_11] : memref<96x64xbf16, #tpu.memory_space<vmem>>, vector<96x64xbf16>
    %cst_12 = arith.constant dense<0.000000e+00> : vector<32x64xf32>
    %13 = tpu.matmul %11, %12, %cst_12 {dimension_numbers = #tpu.dot_dimension_numbers<[1], [0], [0], [1], [0, 0, 1, 1], [], []>} : vector<32x96xbf16>, vector<96x64xbf16>, vector<32x64xf32> -> vector<32x64xf32>
    %14 = vector.shape_cast %13 : vector<32x64xf32> to vector<2x16x64xf32>
    %15 = vector.extract_strided_slice %14 {offsets = [0, 0, 0], sizes = [2, 14, 64], strides = [1, 1, 1]} : vector<2x16x64xf32> to vector<2x14x64xf32>
    %cst_13 = arith.constant dense<0xFF800000> : vector<2x64xf32>
    %16 = vector.multi_reduction <maximumf>, %15, %cst_13 [1] : vector<2x14x64xf32> to vector<2x64xf32>
    %c0_14 = arith.constant 0 : index
    %c0_15 = arith.constant 0 : index
    %17 = vector.load %arg3[%c0_14, %c0_15] : memref<1x64xf32, #tpu.memory_space<vmem>>, vector<1x64xf32>
    %18 = vector.broadcast %17 : vector<1x64xf32> to vector<2x64xf32>
    %19 = arith.addf %16, %18 : vector<2x64xf32>
    %cst_16 = arith.constant 0.000000e+00 : f32
    %20 = vector.broadcast %cst_16 : f32 to vector<2x64xf32>
    %21 = arith.maximumf %19, %20 : vector<2x64xf32>
    %22 = arith.truncf %21 : vector<2x64xf32> to vector<2x64xbf16>
    %c0_17 = arith.constant 0 : index
    %c0_18 = arith.constant 0 : index
    %23 = vector.load %arg4[%c0_17, %c0_18] : memref<64x128xbf16, #tpu.memory_space<vmem>>, vector<64x128xbf16>
    %cst_19 = arith.constant dense<0.000000e+00> : vector<2x128xf32>
    %24 = tpu.matmul %22, %23, %cst_19 {dimension_numbers = #tpu.dot_dimension_numbers<[1], [0], [0], [1], [0, 0, 1, 1], [], []>} : vector<2x64xbf16>, vector<64x128xbf16>, vector<2x128xf32> -> vector<2x128xf32>
    %c0_20 = arith.constant 0 : index
    %c0_21 = arith.constant 0 : index
    %25 = vector.load %arg5[%c0_20, %c0_21] : memref<1x128xf32, #tpu.memory_space<vmem>>, vector<1x128xf32>
    %26 = vector.broadcast %25 : vector<1x128xf32> to vector<2x128xf32>
    %27 = arith.addf %24, %26 : vector<2x128xf32>
    %cst_22 = arith.constant 0.000000e+00 : f32
    %28 = vector.broadcast %cst_22 : f32 to vector<2x128xf32>
    %29 = arith.maximumf %27, %28 : vector<2x128xf32>
    %c0_23 = arith.constant 0 : index
    %c0_24 = arith.constant 0 : index
    %30 = vector.load %arg6[%c0_23, %c0_24] : memref<2x128xf32, #tpu.memory_space<vmem>>, vector<2x128xf32>
    tpu.vector_store %arg6[%c0_23, %c0_24], %29 {strides = array<i32>} : memref<2x128xf32, #tpu.memory_space<vmem>>, vector<2x128xf32>,
    return
  }
  func.func @transform_0(%arg0: i32) -> (i32, i32) {
    %c0_i32 = arith.constant 0 : i32
    %c0_i32_0 = arith.constant 0 : i32
    return %arg0, %c0_i32 : i32, i32
  }
  func.func @transform_1(%arg0: i32) -> (i32, i32) {
    %c0_i32 = arith.constant 0 : i32
    %c0_i32_0 = arith.constant 0 : i32
    %c0_i32_1 = arith.constant 0 : i32
    return %c0_i32, %c0_i32_0 : i32, i32
  }
  func.func @transform_2(%arg0: i32) -> (i32, i32) {
    %c0_i32 = arith.constant 0 : i32
    %c0_i32_0 = arith.constant 0 : i32
    %c0_i32_1 = arith.constant 0 : i32
    return %c0_i32, %c0_i32_0 : i32, i32
  }
  func.func @transform_3(%arg0: i32) -> (i32, i32) {
    %c0_i32 = arith.constant 0 : i32
    %c0_i32_0 = arith.constant 0 : i32
    %c0_i32_1 = arith.constant 0 : i32
    return %c0_i32, %c0_i32_0 : i32, i32
  }
  func.func @transform_4(%arg0: i32) -> (i32, i32) {
    %c0_i32 = arith.constant 0 : i32
    %c0_i32_0 = arith.constant 0 : i32
    %c0_i32_1 = arith.constant 0 : i32
    return %c0_i32, %c0_i32_0 : i32, i32
  }
  func.func @transform_5(%arg0: i32) -> (i32, i32) {
    %c0_i32 = arith.constant 0 : i32
    %c0_i32_0 = arith.constant 0 : i32
    return %arg0, %c0_i32 : i32, i32
  }
}

</mosaic_0001>

<llo_original>
// kernel: tpu_custom_call.1
$region0: #{tpu_custom_call.1}
  #allocation0 [shape = 'u32[]', space=smem, size = 0x4, offset = 0x4, fixed_abs, tag = 'smem constant byte address 0x4 - core index']
  #allocation1 [shape = 'u32[144,128]{1,0:T(1,128)}', space=vmem, size = 0x12000, scoped, tag = 'internal scratch']
  #allocation2 [shape = 'bf16[32,96]{1,0:T(16,128)(2,1)}', space=vmem, size = 0x2000, scoped, tag = 'scratch operand']
  %s0 = inlined_call_operand.hbm [shape: f32[32,32], index: 0, kind: input, shape index: {}]
  %s1 = inlined_call_operand.hbm [shape: bf16[96,64], index: 1, kind: input, shape index: {}]
  %s2 = inlined_call_operand.hbm [shape: f32[1,64], index: 2, kind: input, shape index: {}]
  %s3 = inlined_call_operand.hbm [shape: bf16[64,128], index: 3, kind: input, shape index: {}]
  %s4 = inlined_call_operand.hbm [shape: f32[1,128], index: 4, kind: input, shape index: {}]
  %s5 = inlined_call_operand.hbm [shape: f32[2,128], index: 5, kind: output, shape index: {}]
  %s6 = sld [smem:[#allocation0]]
  $region50: #{tpu_custom_call.1} parent=0
    _
  %s8 = ssub.s32 1, %s6
  %s9 = scalar_select 0, %s8, %s6
  $region1: #{tpu_custom_call.1} parent=0
    #allocation3 [shape = 'u8[16384]{0}', space=vmem, size = 0x4000, scoped, tag = 'input window, operand 0, single buffered']
    #allocation4 [shape = 's32[1]{0}', space=sflag, size = 0x4, scoped, tag = 'scoped memory for tpu_custom_call.1']
    #allocation5 [shape = 's32[1]{0}', space=sflag, size = 0x4, scoped, tag = 'scoped memory for tpu_custom_call.1']
    #allocation6 [shape = 'u8[24576]{0}', space=vmem, size = 0x6000, scoped, tag = 'input window, operand 1, single buffered']
    #allocation7 [shape = 's32[1]{0}', space=sflag, size = 0x4, scoped, tag = 'scoped memory for tpu_custom_call.1']
    #allocation8 [shape = 'u8[512]{0}', space=vmem, size = 0x400, scoped, tag = 'input window, operand 2, single buffered']
    #allocation9 [shape = 'u8[16384]{0}', space=vmem, size = 0x4000, scoped, tag = 'input window, operand 3, single buffered']
    #allocation10 [shape = 's32[1]{0}', space=sflag, size = 0x4, scoped, tag = 'scoped memory for tpu_custom_call.1']
    #allocation11 [shape = 'u8[512]{0}', space=vmem, size = 0x400, scoped, tag = 'input window, operand 4, single buffered']
    #allocation12 [shape = 'u8[1024]{0}', space=vmem, size = 0x400, scoped, tag = 'output window, operand 0, single buffered']
    %10 = vsyncpa [#allocation4], 0
    %11 = vsyncpa [#allocation7], 0
    %12 = vsyncpa [#allocation10], 0
    %13 = vsyncpa [#allocation5], 0
    // Predicated region
    $region2: #{tpu_custom_call.1} parent=1 // pred_check
      _
    $region3: #{tpu_custom_call.1} parent=1 // pred_check_branch
      %15 = sbr.rel (0) target = $region5
    $region4: #{tpu_custom_call.1} parent=1 // pred_region
      %s17 = ssub.s32 512, 512
      %18 = vsyncadd [#allocation4], %s17
      %s19 = sshll.u32 [#allocation3], 4
      %s20 = int_to_ptr.vmem [resolvable:$true] %s19
      %25 = dma.hbm_to_vmem [thread:$0]  %s0, 512, %s20, [#allocation4], 128, 128, 8
    $region5: #{tpu_custom_call.1} parent=1 // pred_fallthru
      _
    // Predicated region
    $region6: #{tpu_custom_call.1} parent=1 // pred_check
      _
    $region7: #{tpu_custom_call.1} parent=1 // pred_check_branch
      %27 = sbr.rel (0) target = $region9
    $region8: #{tpu_custom_call.1} parent=1 // pred_region
      %s29 = ssub.s32 768, 768
      %30 = vsyncadd [#allocation7], %s29
      %s31 = sshll.u32 [#allocation6], 4
      %s32 = int_to_ptr.vmem [resolvable:$true] %s31
      %37 = dma.hbm_to_vmem [thread:$0]  %s1, 768, %s32, [#allocation7], 64, 64, 4
    $region9: #{tpu_custom_call.1} parent=1 // pred_fallthru
      _
    // Predicated region
    $region10: #{tpu_custom_call.1} parent=1 // pred_check
      _
    $region11: #{tpu_custom_call.1} parent=1 // pred_check_branch
      %39 = sbr.rel (0) target = $region13
    $region12: #{tpu_custom_call.1} parent=1 // pred_region
      %s41 = ssub.s32 16, 16
      %42 = vsyncadd [#allocation7], %s41
      %s44 = sshll.u32 [#allocation8], 4
      %s45 = int_to_ptr.vmem [resolvable:$true] %s44
      %47 = dma.hbm_to_vmem [thread:$0]  %s2, 16, %s45, [#allocation7]
    $region13: #{tpu_custom_call.1} parent=1 // pred_fallthru
      _
    // Predicated region
    $region14: #{tpu_custom_call.1} parent=1 // pred_check
      _
    $region15: #{tpu_custom_call.1} parent=1 // pred_check_branch
      %49 = sbr.rel (0) target = $region17
    $region16: #{tpu_custom_call.1} parent=1 // pred_region
      %s51 = ssub.s32 512, 512
      %52 = vsyncadd [#allocation10], %s51
      %s53 = sshll.u32 [#allocation9], 4
      %s54 = int_to_ptr.vmem [resolvable:$true] %s53
      %59 = dma.hbm_to_vmem [thread:$0]  %s3, 512, %s54, [#allocation10], 64, 64, 4
    $region17: #{tpu_custom_call.1} parent=1 // pred_fallthru
      _
    // Predicated region
    $region18: #{tpu_custom_call.1} parent=1 // pred_check
      _
    $region19: #{tpu_custom_call.1} parent=1 // pred_check_branch
      %61 = sbr.rel (0) target = $region21
    $region20: #{tpu_custom_call.1} parent=1 // pred_region
      %s63 = ssub.s32 16, 16
      %64 = vsyncadd [#allocation10], %s63
      %s66 = sshll.u32 [#allocation11], 4
      %s67 = int_to_ptr.vmem [resolvable:$true] %s66
      %69 = dma.hbm_to_vmem [thread:$0]  %s4, 16, %s67, [#allocation10]
    $region21: #{tpu_custom_call.1} parent=1 // pred_fallthru
      _
    // Predicated region
    $region22: #{tpu_custom_call.1} parent=1 // pred_check
      _
    $region23: #{tpu_custom_call.1} parent=1 // pred_check_branch
      %71 = sbr.rel (0) target = $region25
    $region24: #{tpu_custom_call.1} parent=1 // pred_region
      %72 = dma.done [#allocation4], 512
    $region25: #{tpu_custom_call.1} parent=1 // pred_fallthru
      _
    // Predicated region
    $region26: #{tpu_custom_call.1} parent=1 // pred_check
      _
    $region27: #{tpu_custom_call.1} parent=1 // pred_check_branch
      %74 = sbr.rel (0) target = $region29
    $region28: #{tpu_custom_call.1} parent=1 // pred_region
      %75 = dma.done [#allocation7], 768
    $region29: #{tpu_custom_call.1} parent=1 // pred_fallthru
      _
    // Predicated region
    $region30: #{tpu_custom_call.1} parent=1 // pred_check
      _
    $region31: #{tpu_custom_call.1} parent=1 // pred_check_branch
      %77 = sbr.rel (0) target = $region33
    $region32: #{tpu_custom_call.1} parent=1 // pred_region
      %78 = dma.done [#allocation7], 16
    $region33: #{tpu_custom_call.1} parent=1 // pred_fallthru
      _
    // Predicated region
    $region34: #{tpu_custom_call.1} parent=1 // pred_check
      _
    $region35: #{tpu_custom_call.1} parent=1 // pred_check_branch
      %80 = sbr.rel (0) target = $region37
    $region36: #{tpu_custom_call.1} parent=1 // pred_region
      %81 = dma.done [#allocation10], 512
    $region37: #{tpu_custom_call.1} parent=1 // pred_fallthru
      _
    // Predicated region
    $region38: #{tpu_custom_call.1} parent=1 // pred_check
      _
    $region39: #{tpu_custom_call.1} parent=1 // pred_check_branch
      %83 = sbr.rel (0) target = $region41
    $region40: #{tpu_custom_call.1} parent=1 // pred_region
      %84 = dma.done [#allocation10], 16
    $region41: #{tpu_custom_call.1} parent=1 // pred_fallthru
      _
    %v86 = vld [vmem:[#allocation3] sm:$0xff]
    %v87 = vld [vmem:[#allocation3 + $0x8] sm:$0xff]
    %v88 = vld [vmem:[#allocation3 + $0x10] sm:$0xff]
    %v89 = vld [vmem:[#allocation3 + $0x18] sm:$0xff]
    %v90 = vpack.c.bf16 %v87, %v86
    %v91 = vpack.c.bf16 %v89, %v88
    %vm92 = vcmask 261120
    %93 = vst.msk [vmem:[#allocation2] sm:$0xff] %vm92, %v90
    %94 = vst.msk [vmem:[#allocation2 + $0x8] sm:$0xff] %vm92, %v91
    %vm95 = vsmask.f32 7424
    %v97 = vshrl.u32 %v90, 16
    %v99 = vshll.u32 %v90, 16
    %v101 = vrot.slane %v99, 1
    %v102 = vor.u32 %v97, %v101
    %v104 = vshll.u32 %v91, 16
    %v106 = vrot.slane %v104, 1
    %v107 = vsel %vm95, %v102, %v106
    %v108 = vshrl.u32 %v91, 16
    %v110 = vor.u32 %v108, %v106
    %111 = vrot.lane.b32.xlu0 %v107, 32
    %v112 = vpop.permute.xlu0 %111
    %113 = vrot.lane.b32.xlu0 %v110, 32
    %v114 = vpop.permute.xlu0 %113
    %vm117 = vcmask 523520
    %118 = vst.msk [vmem:[#allocation2] sm:$0xff] %vm117, %v112
    %vm119 = vcmask 523520
    %vm120 = vmand %vm119, %vm95
    %v121 = vld [vmem:[#allocation2 + $0x8] sm:$0xff]
    %v122 = vsel %vm120, %v114, %v121
    %123 = vst [vmem:[#allocation2 + $0x8] sm:$0xff] %v122
    %vm124 = vcmask 523527
    %vm125 = vsmask.f32 7966
    %vm126 = vmand %vm124, %vm125
    %v127 = vld [vmem:[#allocation2 + $0x8] sm:$0x80]
    %v128 = vsel %vm126, 0, %v127
    %129 = vst [vmem:[#allocation2 + $0x8] sm:$0x80] %v128
    %vm132 = vcmask 1046528
    %v133 = vrot.slane %v90, 1
    %v134 = vrot.slane %v91, 1
    %v135 = vsel %vm132, %v133, %v134
    %136 = vrot.lane.b32.xlu0 %v135, 64
    %v137 = vpop.permute.xlu0 %136
    %138 = vrot.lane.b32.xlu0 %v134, 64
    %v139 = vpop.permute.xlu0 %138
    %vm142 = vcmask 785920
    %143 = vst.msk [vmem:[#allocation2] sm:$0xff] %vm142, %v137
    %vm144 = vcmask 784896
    %145 = vst.msk [vmem:[#allocation2 + $0x8] sm:$0x7f] %vm144, %v139
    %vm146 = vcmask 785927
    %147 = vst.msk [vmem:[#allocation2 + $0x8] sm:$0x80] %vm146, 0
    %v148 = vld [vmem:[#allocation2] sm:$0xff]
    %v149 = vld [vmem:[#allocation2 + $0x8] sm:$0xff]
    %v150 = vld [vmem:[#allocation6] sm:$0xf]
    %v151 = vld [vmem:[#allocation6 + $0x4] sm:$0xf]
    %v152 = vld [vmem:[#allocation6 + $0x8] sm:$0xf]
    %v153 = vld [vmem:[#allocation6 + $0xc] sm:$0xf]
    %v154 = vld [vmem:[#allocation6 + $0x10] sm:$0xf]
    %v155 = vld [vmem:[#allocation6 + $0x14] sm:$0xf]
    %v156 = vld [vmem:[#allocation6 + $0x18] sm:$0xf]
    %v157 = vld [vmem:[#allocation6 + $0x1c] sm:$0xf]
    %v158 = vld [vmem:[#allocation6 + $0x20] sm:$0xf]
    %v159 = vld [vmem:[#allocation6 + $0x24] sm:$0xf]
    %v160 = vld [vmem:[#allocation6 + $0x28] sm:$0xf]
    %v161 = vld [vmem:[#allocation6 + $0x2c] sm:$0xf]
    %v174 = vunpack.c.l.b16 %v150
    %v175 = vunpack.c.l.b16 %v151
    %v176 = vunpack.c.l.b16 %v152
    %v177 = vunpack.c.l.b16 %v153
    %v178 = vunpack.c.l.b16 %v154
    %v179 = vunpack.c.l.b16 %v155
    %v180 = vunpack.c.l.b16 %v156
    %v181 = vunpack.c.l.b16 %v157
    %v182 = vunpack.c.l.b16 %v158
    %v183 = vunpack.c.l.b16 %v159
    %v184 = vunpack.c.l.b16 %v160
    %v185 = vunpack.c.l.b16 %v161
    %v186 = vpack.c.b16 %v175, %v174
    %v187 = vpack.c.b16 %v177, %v176
    %v188 = vpack.c.b16 %v179, %v178
    %v189 = vpack.c.b16 %v181, %v180
    %v190 = vpack.c.b16 %v183, %v182
    %v191 = vpack.c.b16 %v185, %v184
    %vm198 = vcmask 785408
    %v200 = vsel %vm198, %v148, 0
    %v203 = vsel %vm198, %v149, 0
    %205 = vmatprep.subr.bf16.mxu0 0
    %206 = vmatpush1.bf16.msra.mxu0 %v186
    %207 = vmatprep.subr.bf16.mxu0 0
    %208 = vmatpush1.bf16.msra.mxu0 %v187
    %209 = vmatprep.subr.bf16.mxu0 0
    %210 = vmatpush1.bf16.msra.mxu0 %v188
    %211 = vmatprep.subr.bf16.mxu0 0
    %212 = vmatpush1.bf16.msra.mxu0 %v189
    %213 = vmatprep.subr.bf16.mxu0 0
    %214 = vmatpush1.bf16.msra.mxu0 %v190
    %215 = vmatprep.subr.bf16.mxu0 0
    %216 = vmatpush1.bf16.msra.mxu0 %v191
    %217 = vmatprep.subr.bf16.mxu0 0
    %218 = vmatpush1.bf16.msra.mxu0 0
    %219 = vmatprep.subr.bf16.mxu0 0
    %220 = vmatpush1.bf16.msra.mxu0 0
    %221 = vmatprep.subr.bf16.mxu0 0
    %222 = vmatpush1.bf16.msra.mxu0 0
    %223 = vmatprep.subr.bf16.mxu0 0
    %224 = vmatpush1.bf16.msra.mxu0 0
    %225 = vmatprep.subr.bf16.mxu0 0
    %226 = vmatpush1.bf16.msra.mxu0 0
    %227 = vmatprep.subr.bf16.mxu0 0
    %228 = vmatpush1.bf16.msra.mxu0 0
    %229 = vmatprep.subr.bf16.mxu0 0
    %230 = vmatpush1.bf16.msra.mxu0 0
    %231 = vmatprep.subr.bf16.mxu0 0
    %232 = vmatpush1.bf16.msra.mxu0 0
    %233 = vmatprep.subr.bf16.mxu0 0
    %234 = vmatpush1.bf16.msra.mxu0 0
    %235 = vmatprep.subr.bf16.mxu0 0
    %236 = vmatpush1.bf16.msra.mxu0 0
    %237 = vmatprep.mubr.bf16.mxu0 0
    %238 = vmatmul.mubr.bf16.gmra.mrb[0].mxu0 %v200
    %v239 = vpop.f32.mrb[0].mxu0
    %v240 = vadd.f32 0.0, %v239
    %v241 = vpop.f32.mrb[0].mxu0
    %v242 = vpop.f32.mrb[0].mxu0
    %v243 = vadd.f32 0.0, %v242
    %v244 = vpop.f32.mrb[0].mxu0
    %245 = vmatprep.mubr.bf16.mxu0 0
    %246 = vmatmul.mubr.bf16.gmra.mrb[0].mxu0 %v203
    %v247 = vpop.f32.mrb[0].mxu0
    %v248 = vadd.f32 0.0, %v247
    %v249 = vpop.f32.mrb[0].mxu0
    %v250 = vpop.f32.mrb[0].mxu0
    %v251 = vadd.f32 0.0, %v250
    %v252 = vpop.f32.mrb[0].mxu0
    %253 = vdwg.mxu0
    %vm254 = vcmask 523264
    %v255 = vsel %vm254, %v240, -inf
    %vm256 = vcmask 521216
    %v257 = vsel %vm256, %v243, -inf
    %v258 = vmax.f32 %v255, %v257
    %v259 = vrot.slane %v258, 4
    %v260 = vmax.f32 %v258, %v259
    %v261 = vrot.slane %v260, 2
    %v262 = vmax.f32 %v260, %v261
    %v263 = vrot.slane %v262, 1
    %v264 = vmax.f32 %v262, %v263
    %v265 = vsel %vm254, %v248, -inf
    %v266 = vsel %vm256, %v251, -inf
    %v267 = vmax.f32 %v265, %v266
    %v268 = vrot.slane %v267, 4
    %v269 = vmax.f32 %v267, %v268
    %v270 = vrot.slane %v269, 2
    %v271 = vmax.f32 %v269, %v270
    %v272 = vrot.slane %v271, 1
    %v273 = vmax.f32 %v271, %v272
    %v274 = vld [vmem:[#allocation8] sm:$0x1]
    %v276 = vlaneseq
    %v277 = vshrl.u32 %v276, 7
    %v278 = vsub.s32 0, %v277
    %v279 = vrot.slane %v274, %v278
    %v281 = vadd.f32 %v264, %v279
    %v282 = vadd.f32 %v273, %v279
    %v283 = vmax.f32 %v281, 0.0
    %v284 = vmax.f32 %v282, 0.0
    %v285 = vpack.c.bf16 %v283, %v283
    %v286 = vpack.c.bf16 %v284, %v284
    %v287 = vld [vmem:[#allocation9] sm:$0xf]
    %v288 = vld [vmem:[#allocation9 + $0x4] sm:$0xf]
    %v289 = vld [vmem:[#allocation9 + $0x8] sm:$0xf]
    %v290 = vld [vmem:[#allocation9 + $0xc] sm:$0xf]
    %v291 = vld [vmem:[#allocation9 + $0x10] sm:$0xf]
    %v292 = vld [vmem:[#allocation9 + $0x14] sm:$0xf]
    %v293 = vld [vmem:[#allocation9 + $0x18] sm:$0xf]
    %v294 = vld [vmem:[#allocation9 + $0x1c] sm:$0xf]
    %v295 = vld [vmem:[#allocation11] sm:$0x1]
    %v297 = vlaneseq
    %v298 = vshrl.u32 %v297, 7
    %v299 = vsub.s32 0, %v298
    %v300 = vrot.slane %v295, %v299
    %v304 = vunpack.c.l.b16 %v285
    %v305 = vunpack.c.l.b16 %v286
    %v306 = vrot.slane %v305, 7
    %vm307 = vcmask 1041409
    %v308 = vsel %vm307, %v306, %v304
    %v309 = vpack.c.b16 %v308, %v308
    %v318 = vunpack.c.l.b16 %v287
    %v319 = vunpack.c.l.b16 %v288
    %v320 = vunpack.c.l.b16 %v289
    %v321 = vunpack.c.l.b16 %v290
    %v322 = vunpack.c.l.b16 %v291
    %v323 = vunpack.c.l.b16 %v292
    %v324 = vunpack.c.l.b16 %v293
    %v325 = vunpack.c.l.b16 %v294
    %v326 = vpack.c.b16 %v319, %v318
    %v327 = vpack.c.b16 %v321, %v320
    %v328 = vpack.c.b16 %v323, %v322
    %v329 = vpack.c.b16 %v325, %v324
    %v335 = vsel %vm254, %v309, 0
    %337 = vmatprep.subr.bf16.mxu0 0
    %338 = vmatpush1.bf16.msra.mxu0 %v326
    %339 = vmatprep.subr.bf16.mxu0 0
    %340 = vmatpush1.bf16.msra.mxu0 %v327
    %341 = vmatprep.subr.bf16.mxu0 0
    %342 = vmatpush1.bf16.msra.mxu0 %v328
    %343 = vmatprep.subr.bf16.mxu0 0
    %344 = vmatpush1.bf16.msra.mxu0 %v329
    %345 = vmatprep.subr.bf16.mxu0 0
    %346 = vmatpush1.bf16.msra.mxu0 0
    %347 = vmatprep.subr.bf16.mxu0 0
    %348 = vmatpush1.bf16.msra.mxu0 0
    %349 = vmatprep.subr.bf16.mxu0 0
    %350 = vmatpush1.bf16.msra.mxu0 0
    %351 = vmatprep.subr.bf16.mxu0 0
    %352 = vmatpush1.bf16.msra.mxu0 0
    %353 = vmatprep.subr.bf16.mxu0 0
    %354 = vmatpush1.bf16.msra.mxu0 0
    %355 = vmatprep.subr.bf16.mxu0 0
    %356 = vmatpush1.bf16.msra.mxu0 0
    %357 = vmatprep.subr.bf16.mxu0 0
    %358 = vmatpush1.bf16.msra.mxu0 0
    %359 = vmatprep.subr.bf16.mxu0 0
    %360 = vmatpush1.bf16.msra.mxu0 0
    %361 = vmatprep.subr.bf16.mxu0 0
    %362 = vmatpush1.bf16.msra.mxu0 0
    %363 = vmatprep.subr.bf16.mxu0 0
    %364 = vmatpush1.bf16.msra.mxu0 0
    %365 = vmatprep.subr.bf16.mxu0 0
    %366 = vmatpush1.bf16.msra.mxu0 0
    %367 = vmatprep.subr.bf16.mxu0 0
    %368 = vmatpush1.bf16.msra.mxu0 0
    %369 = vmatprep.mubr.bf16.mxu0 0
    %370 = vmatmul.mubr.bf16.gmra.mrb[0].mxu0 %v335
    %v371 = vpop.f32.mrb[0].mxu0
    %v372 = vadd.f32 %v300, %v371
    %v373 = vpop.f32.mrb[0].mxu0
    %v374 = vpop.f32.mrb[0].mxu0
    %v375 = vpop.f32.mrb[0].mxu0
    %376 = vdwg.mxu0
    %v377 = vmax.f32 %v372, 0.0
    %378 = vst [vmem:[#allocation12] sm:$0x3] %v377
    // Predicated region
    $region42: #{tpu_custom_call.1} parent=1 // pred_check
      _
    $region43: #{tpu_custom_call.1} parent=1 // pred_check_branch
      %380 = sbr.rel (0) target = $region45
    $region44: #{tpu_custom_call.1} parent=1 // pred_region
      %s382 = ssub.s32 32, 32
      %383 = vsyncadd [#allocation5], %s382
      %s385 = sshll.u32 [#allocation12], 4
      %s386 = int_to_ptr.vmem [resolvable:$true] %s385
      %388 = dma.vmem_to_hbm [thread:$0]  %s386, 32, %s5, [#allocation5]
    $region45: #{tpu_custom_call.1} parent=1 // pred_fallthru
      _
    // Predicated region
    $region46: #{tpu_custom_call.1} parent=1 // pred_check
      _
    $region47: #{tpu_custom_call.1} parent=1 // pred_check_branch
      %390 = sbr.rel (0) target = $region49
    $region48: #{tpu_custom_call.1} parent=1 // pred_region
      %391 = dma.done [#allocation5], 32
    $region49: #{tpu_custom_call.1} parent=1 // pred_fallthru
      _
    %392 = vsyncpa [#allocation4], 1
    %393 = vsyncpa [#allocation7], 1
    %394 = vsyncpa [#allocation10], 1
    %395 = vsyncpa [#allocation5], 1

</llo_original>
